<compile_context>
chip_gen: v5e
topology: v5e:2x2
jax: 0.10.0
libtpu: 0.0.40
codegen_flags: <defaults>
</compile_context>

<pallas_src>
import functools

import jax
import jax.numpy as jnp
from jax.experimental import pallas as pl
from jax.experimental.pallas import tpu as pltpu


def _round_up(x: int, m: int) -> int:
    return (x + m - 1) // m * m


def _sublane_align(dtype) -> int:
    return {4: 8, 2: 16, 1: 32}[jnp.dtype(dtype).itemsize]


def _cast(x, dtype):
    return x if x.dtype == dtype else x.astype(dtype)


# --------------------------------------------------------------------------
# Kernels
# --------------------------------------------------------------------------
def _linear_kernel_single_k(x_ref, w_ref, o_ref):
    # Grid (i, j): x block (TM, D_pad), w block (D_pad, TN) -- full-K matmul,
    # output written directly (no accumulator / pl.when needed).
    x = _cast(x_ref[...], w_ref.dtype)            # in-kernel bf16 cast (VPU)
    o_ref[...] = jnp.dot(
        x, w_ref[...], preferred_element_type=jnp.float32
    ).astype(o_ref.dtype)


def _linear_kernel_multi_k_accout(x_ref, w_ref, o_ref):
    # Grid (i, j, k); o_ref is f32 and resident across k -> use it directly
    # as the accumulator (no VMEM scratch, no final copy).
    @pl.when(pl.program_id(2) == 0)
    def _():
        o_ref[...] = jnp.zeros_like(o_ref)

    x = _cast(x_ref[...], w_ref.dtype)
    o_ref[...] += jnp.dot(x, w_ref[...], preferred_element_type=jnp.float32)


def _linear_kernel_multi_k_scratch(x_ref, w_ref, o_ref, acc_ref):
    # Grid (i, j, k); non-f32 output -> f32 VMEM accumulator, cast at k==last.
    @pl.when(pl.program_id(2) == 0)
    def _():
        acc_ref[...] = jnp.zeros_like(acc_ref)

    x = _cast(x_ref[...], w_ref.dtype)
    acc_ref[...] += jnp.dot(x, w_ref[...], preferred_element_type=jnp.float32)

    @pl.when(pl.program_id(2) == pl.num_programs(2) - 1)
    def _():
        o_ref[...] = acc_ref[...].astype(o_ref.dtype)


# --------------------------------------------------------------------------
# Parameter preparation (do this ONCE, at parameter-creation time)
# --------------------------------------------------------------------------
def prepare_weight(weight: jax.Array, compute_dtype=jnp.bfloat16) -> jax.Array:
    """Pad weight to a lane-dense multiple of 128, transpose to (K=in, N=out)
    and cast to the MXU compute dtype.  Persistent-parameter preprocessing:
    pay the D^2 pad / cast / transpose exactly once, not per forward."""
    in_dim = weight.shape[0]
    assert weight.shape == (in_dim, in_dim)
    d_pad = _round_up(in_dim, 128)
    w_t = weight.T  # (in, out) so the kernel contracts last-of-x with first-of-w
    if d_pad != in_dim:
        w_t = jnp.pad(w_t, ((0, d_pad - in_dim), (0, d_pad - in_dim)))
    if compute_dtype is not None:
        w_t = w_t.astype(compute_dtype)
    return w_t


def init_linear_weight(in_dim: int, identity_init: bool, key) -> jax.Array:
    """Parameter init matching the PyTorch __init__ (raw, untransposed)."""
    if identity_init:
        return jnp.eye(in_dim, dtype=jnp.float32)
    return jax.random.normal(key, (in_dim, in_dim), dtype=jnp.float32) * (
        in_dim ** (-0.5)
    )


# --------------------------------------------------------------------------
# Forward
# --------------------------------------------------------------------------
def linear_forward(
    x: jax.Array,
    weight: jax.Array,
    *,
    compute_dtype=jnp.bfloat16,
    prepared_weight: jax.Array | None = None,
    max_tk: int | None = None,
) -> jax.Array:
    """Equivalent of Linear.forward: x @ weight.T (no bias).

    compute_dtype: MXU operand dtype (default bf16; accumulation stays f32,
      output keeps x.dtype).  Pass None for full-f32 matmul.
    prepared_weight: output of prepare_weight(weight, compute_dtype); if given
      the per-call D^2 pad/cast/transpose passes are skipped.
    max_tk: testing hook to force K-axis tiling at small D.
    """
    in_dim = weight.shape[0]
    assert weight.shape == (in_dim, in_dim)
    assert x.shape[-1] == in_dim

    orig_shape = x.shape
    out_dtype = x.dtype
    x2 = x.reshape(-1, in_dim)
    m = x2.shape[0]

    # ---- Tiny-shape fallback: padding to 128 lanes wastes >=75% of the MXU
    # and the per-call pad passes dominate; XLA's fused matmul wins here. ----
    if in_dim < 128 or m * in_dim < 128 * 128:
        y = jnp.einsum("md,nd->mn", x2, _cast(weight, x2.dtype)).astype(out_dtype)
        return y.reshape(orig_shape)

    d_pad = _round_up(in_dim, 128)
    if prepared_weight is None:
        prepared_weight = prepare_weight(weight, compute_dtype)
    w_t = prepared_weight
    assert w_t.shape == (d_pad, d_pad)

    # ---- Tile selection ----------------------------------------------------
    tm_align = max(
        _sublane_align(x2.dtype),
        _sublane_align(out_dtype),
        _sublane_align(w_t.dtype),
    )

    # TK: full-D fast path when it fits, else the largest power-of-two divisor.
    tk_cap = 2048 if max_tk is None else max_tk
    if d_pad <= tk_cap:
        tk = d_pad
    else:
        tk = 128
        for cand in (2048, 1024, 512, 256):
            if cand <= tk_cap and d_pad % cand == 0:
                tk = cand
                break

    # TN: largest of {512, 256, 128} dividing D_pad (lane-dense output stores).
    tn = 128
    for cand in (512, 256):
        if d_pad % cand == 0:
            tn = cand
            break

    # TM: full-M block when M is small, else the candidate with least padding.
    if m <= 512:
        tm = _round_up(m, tm_align)
        m_pad = tm
    else:
        tm, m_pad = 512, _round_up(m, 512)
        for cand in (512, 384, 256, 128):
            mp = _round_up(m, cand)
            if mp < m_pad:
                tm, m_pad = cand, mp

    # ---- Zero-pad x to tile multiples (zero rows/cols contribute 0) --------
    if m_pad != m or d_pad != in_dim:
        x2 = jnp.pad(x2, ((0, m_pad - m), (0, d_pad - in_dim)))

    grid_i = m_pad // tm
    grid_j = d_pad // tn
    grid_k = d_pad // tk

    # ---- Cost estimate (counts re-reads) & VMEM budget ----------------------
    x_bytes = m_pad * d_pad * x2.dtype.itemsize
    w_bytes = d_pad * d_pad * w_t.dtype.itemsize
    o_bytes = m_pad * d_pad * jnp.dtype(out_dtype).itemsize
    cost = pl.CostEstimate(
        flops=2 * m_pad * d_pad * d_pad,
        transcendentals=0,
        bytes_accessed=x_bytes * grid_j + w_bytes * grid_i + o_bytes,
    )

    resident = (
        2 * tm * tk * x2.dtype.itemsize
        + 2 * tk * tn * w_t.dtype.itemsize
        + 2 * tm * tn * jnp.dtype(out_dtype).itemsize
    )

    if grid_k == 1:
        kernel = _linear_kernel_single_k
        grid = (grid_i, grid_j)
        in_specs = [
            pl.BlockSpec((tm, tk), lambda i, j: (i, 0)),
            pl.BlockSpec((tk, tn), lambda i, j: (0, j)),
        ]
        out_specs = pl.BlockSpec((tm, tn), lambda i, j: (i, j))
        scratch = []
        semantics = ("parallel", "parallel")
    else:
        grid = (grid_i, grid_j, grid_k)
        in_specs = [
            pl.BlockSpec((tm, tk), lambda i, j, k: (i, k)),
            pl.BlockSpec((tk, tn), lambda i, j, k: (k, j)),
        ]
        out_specs = pl.BlockSpec((tm, tn), lambda i, j, k: (i, j))
        semantics = ("parallel", "parallel", "arbitrary")
        if jnp.dtype(out_dtype) == jnp.dtype(jnp.float32):
            kernel = _linear_kernel_multi_k_accout
            scratch = []
        else:
            kernel = _linear_kernel_multi_k_scratch
            scratch = [pltpu.VMEM((tm, tn), jnp.float32)]
            resident += tm * tn * 4

    # Explicit scoped-VMEM limit; capped at 48 MiB so it is safe on v7x
    # (64 MiB physical) as well as v5e/v6e (128 MiB physical).
    vmem_limit = min(max(2 * resident + (2 << 20), 32 << 20), 48 << 20)

    out = pl.pallas_call(
        kernel,
        out_shape=jax.ShapeDtypeStruct((m_pad, d_pad), out_dtype),
        grid_spec=pltpu.PrefetchScalarGridSpec(
            num_scalar_prefetch=0,
            grid=grid,
            in_specs=in_specs,
            out_specs=out_specs,
            scratch_shapes=scratch,
        ),
        compiler_params=pltpu.CompilerParams(
            dimension_semantics=semantics,
            vmem_limit_bytes=vmem_limit,
        ),
        cost_estimate=cost,
    )(x2, w_t)

    out = out[:m, :in_dim]
    return out.reshape(orig_shape)


# --------------------------------------------------------------------------
# Self-tests
# --------------------------------------------------------------------------
if __name__ == "__main__":
    key = jax.random.PRNGKey(0)
    k_x1, k_w1, k_x2, k_w2, k_x3, k_w3 = jax.random.split(key, 6)

    # ---- Test 1: module-typical tiny shape (in_dim~32) -> fallback path ----
    batch, seq, in_dim = 2, 8, 32
    x = jax.random.normal(k_x1, (batch, seq, in_dim), dtype=jnp.float32)

    w_id = init_linear_weight(in_dim, identity_init=True, key=k_w1)
    y_id = jax.block_until_ready(linear_forward(x, w_id))
    assert y_id.shape == x.shape
    assert jnp.allclose(y_id, x @ w_id.T, atol=1e-5), "tiny identity mismatch"

    w_rand = init_linear_weight(in_dim, identity_init=False, key=k_w1)
    y_rand = jax.block_until_ready(linear_forward(x, w_rand))
    assert jnp.allclose(y_rand, x @ w_rand.T, atol=1e-5), "tiny random mismatch"

    # ---- Test 2: Pallas fast path (no K axis), f32 and bf16 MXU operands ----
    b2, s2, d2 = 2, 64, 256  # M=128, D_pad=256 -> grid (1, 1)
    xl = jax.random.normal(k_x2, (b2, s2, d2), dtype=jnp.float32)
    wl = init_linear_weight(d2, identity_init=False, key=k_w2)
    ref = jnp.einsum("bsd,nd->bsn", xl, wl)

    # f32 operands: tight check of the kernel itself
    wl_f32 = prepare_weight(wl, compute_dtype=None)
    y_f32 = jax.block_until_ready(
        linear_forward(xl, wl, compute_dtype=None, prepared_weight=wl_f32)
    )
    assert y_f32.shape == xl.shape
    err = float(jnp.max(jnp.abs(y_f32 - ref)))
    assert err < 1e-4, f"fast-path f32 mismatch, max abs err {err}"

    # identity weight through the Pallas path stays exact in f32
    w_eye = init_linear_weight(d2, identity_init=True, key=k_w2)
    y_eye = jax.block_until_ready(
        linear_forward(xl, w_eye, compute_dtype=None,
                       prepared_weight=prepare_weight(w_eye, compute_dtype=None))
    )
    assert jnp.allclose(y_eye, xl, atol=1e-6), "fast-path identity mismatch"

    # default bf16 operand path (expected bf16-level precision, not a bug)
    wl_bf16 = prepare_weight(wl)  # one-time pad + transpose + bf16 cast
    y_bf16 = jax.block_until_ready(linear_forward(xl, wl, prepared_weight=wl_bf16))
    err_bf16 = float(jnp.max(jnp.abs(y_bf16 - ref)))
    assert err_bf16 < 5e-2, f"fast-path bf16 mismatch, max abs err {err_bf16}"

    # ---- Test 3: K-tiled accumulation path (forced via max_tk) --------------
    b3, s3, d3 = 2, 64, 384  # M=128, D_pad=384, max_tk=128 -> grid (1, 3, 3)
    xk = jax.random.normal(k_x3, (b3, s3, d3), dtype=jnp.float32)
    wk = init_linear_weight(d3, identity_init=False, key=k_w3)
    yk = jax.block_until_ready(
        linear_forward(
            xk, wk, compute_dtype=None,
            prepared_weight=prepare_weight(wk, compute_dtype=None),
            max_tk=128,
        )
    )
    refk = jnp.einsum("bsd,nd->bsn", xk, wk)
    errk = float(jnp.max(jnp.abs(yk - refk)))
    assert yk.shape == xk.shape
    assert errk < 1e-3, f"k-tiled mismatch, max abs err {errk}"

    print("KERNEL_OK")
</pallas_src>

<mosaic_0001>
module attributes {stable_mosaic.version = 11 : i64} {
  func.func @_linear_kernel_single_k(%arg0: i32, %arg1: i32, %arg2: memref<128x256xf32, #tpu.memory_space<vmem>>, %arg3: memref<256x256xf32, #tpu.memory_space<vmem>>, %arg4: memref<128x256xf32, #tpu.memory_space<vmem>>) attributes {dimension_semantics = [#tpu.dimension_semantics<parallel>, #tpu.dimension_semantics<parallel>], iteration_bounds = array<i64: 1, 1>, scalar_prefetch = 0 : i64, scratch_operands = 0 : i64, tpu.core_type = #tpu.core_type<tc>, window_params = [{transform_indices = @transform_0, window_bounds = array<i64: 128, 256>}, {transform_indices = @transform_1, window_bounds = array<i64: 256, 256>}, {transform_indices = @transform_2, window_bounds = array<i64: 128, 256>}]} {
    %c0 = arith.constant 0 : index
    %c0_0 = arith.constant 0 : index
    %0 = vector.load %arg2[%c0, %c0_0] : memref<128x256xf32, #tpu.memory_space<vmem>>, vector<128x256xf32>
    %c0_1 = arith.constant 0 : index
    %c0_2 = arith.constant 0 : index
    %1 = vector.load %arg3[%c0_1, %c0_2] : memref<256x256xf32, #tpu.memory_space<vmem>>, vector<256x256xf32>
    %cst = arith.constant dense<0.000000e+00> : vector<128x256xf32>
    %2 = tpu.matmul %0, %1, %cst {dimension_numbers = #tpu.dot_dimension_numbers<[1], [0], [0], [1], [0, 0, 1, 1], [], []>} : vector<128x256xf32>, vector<256x256xf32>, vector<128x256xf32> -> vector<128x256xf32>
    %c0_3 = arith.constant 0 : index
    %c0_4 = arith.constant 0 : index
    %3 = vector.load %arg4[%c0_3, %c0_4] : memref<128x256xf32, #tpu.memory_space<vmem>>, vector<128x256xf32>
    tpu.vector_store %arg4[%c0_3, %c0_4], %2 {strides = array<i32>} : memref<128x256xf32, #tpu.memory_space<vmem>>, vector<128x256xf32>,
    return
  }
  func.func @transform_0(%arg0: i32, %arg1: i32) -> (i32, i32) {
    %c0_i32 = arith.constant 0 : i32
    %c0_i32_0 = arith.constant 0 : i32
    return %arg0, %c0_i32 : i32, i32
  }
  func.func @transform_1(%arg0: i32, %arg1: i32) -> (i32, i32) {
    %c0_i32 = arith.constant 0 : i32
    %c0_i32_0 = arith.constant 0 : i32
    return %c0_i32, %arg1 : i32, i32
  }
  func.func @transform_2(%arg0: i32, %arg1: i32) -> (i32, i32) {
    %c0_i32 = arith.constant 0 : i32
    return %arg0, %arg1 : i32, i32
  }
}

</mosaic_0001>

<llo_original>
// kernel: tpu_custom_call.1
$region0: #{tpu_custom_call.1}
  #allocation0 [shape = 'u32[]', space=smem, size = 0x4, offset = 0x4, fixed_abs, tag = 'smem constant byte address 0x4 - core index']
  #allocation1 [shape = 'u32[72,128]{1,0:T(1,128)}', space=vmem, size = 0x9000, scoped, tag = 'internal scratch']
  %s0 = inlined_call_operand.hbm [shape: f32[128,256], index: 0, kind: input, shape index: {}]
  %s1 = inlined_call_operand.hbm [shape: f32[256,256], index: 1, kind: input, shape index: {}]
  %s2 = inlined_call_operand.hbm [shape: f32[128,256], index: 2, kind: output, shape index: {}]
  %s3 = sld [smem:[#allocation0]]
  $region26: #{tpu_custom_call.1} parent=0
    _
  %s5 = ssub.s32 1, %s3
  %s6 = scalar_select 0, %s5, %s3
  $region1: #{tpu_custom_call.1} parent=0
    #allocation2 [shape = 'u8[131072]{0}', space=vmem, size = 0x20000, scoped, tag = 'input window, operand 0, single buffered']
    #allocation3 [shape = 's32[1]{0}', space=sflag, size = 0x4, scoped, tag = 'scoped memory for tpu_custom_call.1']
    #allocation4 [shape = 's32[1]{0}', space=sflag, size = 0x4, scoped, tag = 'scoped memory for tpu_custom_call.1']
    #allocation5 [shape = 'u8[262144]{0}', space=vmem, size = 0x40000, scoped, tag = 'input window, operand 1, single buffered']
    #allocation6 [shape = 's32[1]{0}', space=sflag, size = 0x4, scoped, tag = 'scoped memory for tpu_custom_call.1']
    #allocation7 [shape = 'u8[131072]{0}', space=vmem, size = 0x20000, scoped, tag = 'output window, operand 0, single buffered']
    %7 = vsyncpa [#allocation3], 0
    %8 = vsyncpa [#allocation6], 0
    %9 = vsyncpa [#allocation4], 0
    // Predicated region
    $region2: #{tpu_custom_call.1} parent=1 // pred_check
      _
    $region3: #{tpu_custom_call.1} parent=1 // pred_check_branch
      %11 = sbr.rel (0) target = $region5
    $region4: #{tpu_custom_call.1} parent=1 // pred_region
      %13 = vsyncadd [#allocation3], 0
      %s14 = sshll.u32 %s0, 4
      %s15 = int_to_ptr.hbm [resolvable:$true] %s14
      %s16 = sshll.u32 [#allocation2], 4
      %s17 = int_to_ptr.vmem [resolvable:$true] %s16
      %22 = dma.hbm_to_vmem [thread:$0]  %s15, 4096, %s17, [#allocation3], 256, 256, 16
    $region5: #{tpu_custom_call.1} parent=1 // pred_fallthru
      _
    // Predicated region
    $region6: #{tpu_custom_call.1} parent=1 // pred_check
      _
    $region7: #{tpu_custom_call.1} parent=1 // pred_check_branch
      %24 = sbr.rel (0) target = $region9
    $region8: #{tpu_custom_call.1} parent=1 // pred_region
      %26 = vsyncadd [#allocation6], 0
      %s27 = sshll.u32 %s1, 4
      %s28 = int_to_ptr.hbm [resolvable:$true] %s27
      %s29 = sshll.u32 [#allocation5], 4
      %s30 = int_to_ptr.vmem [resolvable:$true] %s29
      %35 = dma.hbm_to_vmem [thread:$0]  %s28, 8192, %s30, [#allocation6], 256, 256, 16
    $region9: #{tpu_custom_call.1} parent=1 // pred_fallthru
      _
    // Predicated region
    $region10: #{tpu_custom_call.1} parent=1 // pred_check
      _
    $region11: #{tpu_custom_call.1} parent=1 // pred_check_branch
      %37 = sbr.rel (0) target = $region13
    $region12: #{tpu_custom_call.1} parent=1 // pred_region
      %39 = dma.done [#allocation3], 4096
    $region13: #{tpu_custom_call.1} parent=1 // pred_fallthru
      _
    // Predicated region
    $region14: #{tpu_custom_call.1} parent=1 // pred_check
      _
    $region15: #{tpu_custom_call.1} parent=1 // pred_check_branch
      %41 = sbr.rel (0) target = $region17
    $region16: #{tpu_custom_call.1} parent=1 // pred_region
      %43 = dma.done [#allocation6], 8192
    $region17: #{tpu_custom_call.1} parent=1 // pred_fallthru
      _
    %v44 = vld [vmem:[#allocation2] sm:$0xff]
    %v45 = vld [vmem:[#allocation2 + $0x8] sm:$0xff]
    %v46 = vld [vmem:[#allocation2 + $0x10] sm:$0xff]
    %v47 = vld [vmem:[#allocation2 + $0x18] sm:$0xff]
    %v48 = vld [vmem:[#allocation2 + $0x20] sm:$0xff]
    %v49 = vld [vmem:[#allocation2 + $0x28] sm:$0xff]
    %v50 = vld [vmem:[#allocation2 + $0x30] sm:$0xff]
    %v51 = vld [vmem:[#allocation2 + $0x38] sm:$0xff]
    %v52 = vld [vmem:[#allocation2 + $0x40] sm:$0xff]
    %v53 = vld [vmem:[#allocation2 + $0x48] sm:$0xff]
    %v54 = vld [vmem:[#allocation2 + $0x50] sm:$0xff]
    %v55 = vld [vmem:[#allocation2 + $0x58] sm:$0xff]
    %v56 = vld [vmem:[#allocation2 + $0x60] sm:$0xff]
    %v57 = vld [vmem:[#allocation2 + $0x68] sm:$0xff]
    %v58 = vld [vmem:[#allocation2 + $0x70] sm:$0xff]
    %v59 = vld [vmem:[#allocation2 + $0x78] sm:$0xff]
    %v60 = vld [vmem:[#allocation2 + $0x80] sm:$0xff]
    %v61 = vld [vmem:[#allocation2 + $0x88] sm:$0xff]
    %v62 = vld [vmem:[#allocation2 + $0x90] sm:$0xff]
    %v63 = vld [vmem:[#allocation2 + $0x98] sm:$0xff]
    %v64 = vld [vmem:[#allocation2 + $0xa0] sm:$0xff]
    %v65 = vld [vmem:[#allocation2 + $0xa8] sm:$0xff]
    %v66 = vld [vmem:[#allocation2 + $0xb0] sm:$0xff]
    %v67 = vld [vmem:[#allocation2 + $0xb8] sm:$0xff]
    %v68 = vld [vmem:[#allocation2 + $0xc0] sm:$0xff]
    %v69 = vld [vmem:[#allocation2 + $0xc8] sm:$0xff]
    %v70 = vld [vmem:[#allocation2 + $0xd0] sm:$0xff]
    %v71 = vld [vmem:[#allocation2 + $0xd8] sm:$0xff]
    %v72 = vld [vmem:[#allocation2 + $0xe0] sm:$0xff]
    %v73 = vld [vmem:[#allocation2 + $0xe8] sm:$0xff]
    %v74 = vld [vmem:[#allocation2 + $0xf0] sm:$0xff]
    %v75 = vld [vmem:[#allocation2 + $0xf8] sm:$0xff]
    %v76 = vld [vmem:[#allocation5] sm:$0xff]
    %v77 = vld [vmem:[#allocation5 + $0x8] sm:$0xff]
    %v78 = vld [vmem:[#allocation5 + $0x10] sm:$0xff]
    %v79 = vld [vmem:[#allocation5 + $0x18] sm:$0xff]
    %v80 = vld [vmem:[#allocation5 + $0x20] sm:$0xff]
    %v81 = vld [vmem:[#allocation5 + $0x28] sm:$0xff]
    %v82 = vld [vmem:[#allocation5 + $0x30] sm:$0xff]
    %v83 = vld [vmem:[#allocation5 + $0x38] sm:$0xff]
    %v84 = vld [vmem:[#allocation5 + $0x40] sm:$0xff]
    %v85 = vld [vmem:[#allocation5 + $0x48] sm:$0xff]
    %v86 = vld [vmem:[#allocation5 + $0x50] sm:$0xff]
    %v87 = vld [vmem:[#allocation5 + $0x58] sm:$0xff]
    %v88 = vld [vmem:[#allocation5 + $0x60] sm:$0xff]
    %v89 = vld [vmem:[#allocation5 + $0x68] sm:$0xff]
    %v90 = vld [vmem:[#allocation5 + $0x70] sm:$0xff]
    %v91 = vld [vmem:[#allocation5 + $0x78] sm:$0xff]
    %v92 = vld [vmem:[#allocation5 + $0x80] sm:$0xff]
    %v93 = vld [vmem:[#allocation5 + $0x88] sm:$0xff]
    %v94 = vld [vmem:[#allocation5 + $0x90] sm:$0xff]
    %v95 = vld [vmem:[#allocation5 + $0x98] sm:$0xff]
    %v96 = vld [vmem:[#allocation5 + $0xa0] sm:$0xff]
    %v97 = vld [vmem:[#allocation5 + $0xa8] sm:$0xff]
    %v98 = vld [vmem:[#allocation5 + $0xb0] sm:$0xff]
    %v99 = vld [vmem:[#allocation5 + $0xb8] sm:$0xff]
    %v100 = vld [vmem:[#allocation5 + $0xc0] sm:$0xff]
    %v101 = vld [vmem:[#allocation5 + $0xc8] sm:$0xff]
    %v102 = vld [vmem:[#allocation5 + $0xd0] sm:$0xff]
    %v103 = vld [vmem:[#allocation5 + $0xd8] sm:$0xff]
    %v104 = vld [vmem:[#allocation5 + $0xe0] sm:$0xff]
    %v105 = vld [vmem:[#allocation5 + $0xe8] sm:$0xff]
    %v106 = vld [vmem:[#allocation5 + $0xf0] sm:$0xff]
    %v107 = vld [vmem:[#allocation5 + $0xf8] sm:$0xff]
    %v108 = vld [vmem:[#allocation5 + $0x100] sm:$0xff]
    %v109 = vld [vmem:[#allocation5 + $0x108] sm:$0xff]
    %v110 = vld [vmem:[#allocation5 + $0x110] sm:$0xff]
    %v111 = vld [vmem:[#allocation5 + $0x118] sm:$0xff]
    %v112 = vld [vmem:[#allocation5 + $0x120] sm:$0xff]
    %v113 = vld [vmem:[#allocation5 + $0x128] sm:$0xff]
    %v114 = vld [vmem:[#allocation5 + $0x130] sm:$0xff]
    %v115 = vld [vmem:[#allocation5 + $0x138] sm:$0xff]
    %v116 = vld [vmem:[#allocation5 + $0x140] sm:$0xff]
    %v117 = vld [vmem:[#allocation5 + $0x148] sm:$0xff]
    %v118 = vld [vmem:[#allocation5 + $0x150] sm:$0xff]
    %v119 = vld [vmem:[#allocation5 + $0x158] sm:$0xff]
    %v120 = vld [vmem:[#allocation5 + $0x160] sm:$0xff]
    %v121 = vld [vmem:[#allocation5 + $0x168] sm:$0xff]
    %v122 = vld [vmem:[#allocation5 + $0x170] sm:$0xff]
    %v123 = vld [vmem:[#allocation5 + $0x178] sm:$0xff]
    %v124 = vld [vmem:[#allocation5 + $0x180] sm:$0xff]
    %v125 = vld [vmem:[#allocation5 + $0x188] sm:$0xff]
    %v126 = vld [vmem:[#allocation5 + $0x190] sm:$0xff]
    %v127 = vld [vmem:[#allocation5 + $0x198] sm:$0xff]
    %v128 = vld [vmem:[#allocation5 + $0x1a0] sm:$0xff]
    %v129 = vld [vmem:[#allocation5 + $0x1a8] sm:$0xff]
    %v130 = vld [vmem:[#allocation5 + $0x1b0] sm:$0xff]
    %v131 = vld [vmem:[#allocation5 + $0x1b8] sm:$0xff]
    %v132 = vld [vmem:[#allocation5 + $0x1c0] sm:$0xff]
    %v133 = vld [vmem:[#allocation5 + $0x1c8] sm:$0xff]
    %v134 = vld [vmem:[#allocation5 + $0x1d0] sm:$0xff]
    %v135 = vld [vmem:[#allocation5 + $0x1d8] sm:$0xff]
    %v136 = vld [vmem:[#allocation5 + $0x1e0] sm:$0xff]
    %v137 = vld [vmem:[#allocation5 + $0x1e8] sm:$0xff]
    %v138 = vld [vmem:[#allocation5 + $0x1f0] sm:$0xff]
    %v139 = vld [vmem:[#allocation5 + $0x1f8] sm:$0xff]
    %140 = vmatpush.msra.mxu0 %v106
    %141 = vmatpush.msra.mxu0 %v104
    %142 = vmatpush.msra.mxu0 %v102
    %143 = vmatpush.msra.mxu0 %v100
    %144 = vmatpush.msra.mxu0 %v98
    %145 = vmatpush.msra.mxu0 %v96
    %146 = vmatpush.msra.mxu0 %v94
    %147 = vmatpush.msra.mxu0 %v92
    %148 = vmatpush.msra.mxu0 %v90
    %149 = vmatpush.msra.mxu0 %v88
    %150 = vmatpush.msra.mxu0 %v86
    %151 = vmatpush.msra.mxu0 %v84
    %152 = vmatpush.msra.mxu0 %v82
    %153 = vmatpush.msra.mxu0 %v80
    %154 = vmatpush.msra.mxu0 %v78
    %155 = vmatpush.msra.mxu0 %v76
    %156 = vmatmul.f32.gmra.mxu0 %v44
    %v157 = vpop.f32.mrf.mxu0
    %v158 = vadd.f32 0.0, %v157
    %159 = vmatmul.f32.gmra.mxu0 %v46
    %v160 = vpop.f32.mrf.mxu0
    %v161 = vadd.f32 0.0, %v160
    %162 = vmatmul.f32.gmra.mxu0 %v48
    %v163 = vpop.f32.mrf.mxu0
    %v164 = vadd.f32 0.0, %v163
    %165 = vmatmul.f32.gmra.mxu0 %v50
    %v166 = vpop.f32.mrf.mxu0
    %v167 = vadd.f32 0.0, %v166
    %168 = vmatmul.f32.gmra.mxu0 %v52
    %v169 = vpop.f32.mrf.mxu0
    %v170 = vadd.f32 0.0, %v169
    %171 = vmatmul.f32.gmra.mxu0 %v54
    %v172 = vpop.f32.mrf.mxu0
    %v173 = vadd.f32 0.0, %v172
    %174 = vmatmul.f32.gmra.mxu0 %v56
    %v175 = vpop.f32.mrf.mxu0
    %v176 = vadd.f32 0.0, %v175
    %177 = vmatmul.f32.gmra.mxu0 %v58
    %v178 = vpop.f32.mrf.mxu0
    %v179 = vadd.f32 0.0, %v178
    %180 = vmatmul.f32.gmra.mxu0 %v60
    %v181 = vpop.f32.mrf.mxu0
    %v182 = vadd.f32 0.0, %v181
    %183 = vmatmul.f32.gmra.mxu0 %v62
    %v184 = vpop.f32.mrf.mxu0
    %v185 = vadd.f32 0.0, %v184
    %186 = vmatmul.f32.gmra.mxu0 %v64
    %v187 = vpop.f32.mrf.mxu0
    %v188 = vadd.f32 0.0, %v187
    %189 = vmatmul.f32.gmra.mxu0 %v66
    %v190 = vpop.f32.mrf.mxu0
    %v191 = vadd.f32 0.0, %v190
    %192 = vmatmul.f32.gmra.mxu0 %v68
    %v193 = vpop.f32.mrf.mxu0
    %v194 = vadd.f32 0.0, %v193
    %195 = vmatmul.f32.gmra.mxu0 %v70
    %v196 = vpop.f32.mrf.mxu0
    %v197 = vadd.f32 0.0, %v196
    %198 = vmatmul.f32.gmra.mxu0 %v72
    %v199 = vpop.f32.mrf.mxu0
    %v200 = vadd.f32 0.0, %v199
    %201 = vmatmul.f32.gmra.mxu0 %v74
    %v202 = vpop.f32.mrf.mxu0
    %v203 = vadd.f32 0.0, %v202
    %204 = vdwg.mxu0
    %205 = vmatpush.msra.mxu0 %v138
    %206 = vmatpush.msra.mxu0 %v136
    %207 = vmatpush.msra.mxu0 %v134
    %208 = vmatpush.msra.mxu0 %v132
    %209 = vmatpush.msra.mxu0 %v130
    %210 = vmatpush.msra.mxu0 %v128
    %211 = vmatpush.msra.mxu0 %v126
    %212 = vmatpush.msra.mxu0 %v124
    %213 = vmatpush.msra.mxu0 %v122
    %214 = vmatpush.msra.mxu0 %v120
    %215 = vmatpush.msra.mxu0 %v118
    %216 = vmatpush.msra.mxu0 %v116
    %217 = vmatpush.msra.mxu0 %v114
    %218 = vmatpush.msra.mxu0 %v112
    %219 = vmatpush.msra.mxu0 %v110
    %220 = vmatpush.msra.mxu0 %v108
    %221 = vmatmul.f32.gmra.mxu0 %v45
    %v222 = vpop.f32.mrf.mxu0
    %v223 = vadd.f32 %v158, %v222
    %224 = vmatmul.f32.gmra.mxu0 %v47
    %v225 = vpop.f32.mrf.mxu0
    %v226 = vadd.f32 %v161, %v225
    %227 = vmatmul.f32.gmra.mxu0 %v49
    %v228 = vpop.f32.mrf.mxu0
    %v229 = vadd.f32 %v164, %v228
    %230 = vmatmul.f32.gmra.mxu0 %v51
    %v231 = vpop.f32.mrf.mxu0
    %v232 = vadd.f32 %v167, %v231
    %233 = vmatmul.f32.gmra.mxu0 %v53
    %v234 = vpop.f32.mrf.mxu0
    %v235 = vadd.f32 %v170, %v234
    %236 = vmatmul.f32.gmra.mxu0 %v55
    %v237 = vpop.f32.mrf.mxu0
    %v238 = vadd.f32 %v173, %v237
    %239 = vmatmul.f32.gmra.mxu0 %v57
    %v240 = vpop.f32.mrf.mxu0
    %v241 = vadd.f32 %v176, %v240
    %242 = vmatmul.f32.gmra.mxu0 %v59
    %v243 = vpop.f32.mrf.mxu0
    %v244 = vadd.f32 %v179, %v243
    %245 = vmatmul.f32.gmra.mxu0 %v61
    %v246 = vpop.f32.mrf.mxu0
    %v247 = vadd.f32 %v182, %v246
    %248 = vmatmul.f32.gmra.mxu0 %v63
    %v249 = vpop.f32.mrf.mxu0
    %v250 = vadd.f32 %v185, %v249
    %251 = vmatmul.f32.gmra.mxu0 %v65
    %v252 = vpop.f32.mrf.mxu0
    %v253 = vadd.f32 %v188, %v252
    %254 = vmatmul.f32.gmra.mxu0 %v67
    %v255 = vpop.f32.mrf.mxu0
    %v256 = vadd.f32 %v191, %v255
    %257 = vmatmul.f32.gmra.mxu0 %v69
    %v258 = vpop.f32.mrf.mxu0
    %v259 = vadd.f32 %v194, %v258
    %260 = vmatmul.f32.gmra.mxu0 %v71
    %v261 = vpop.f32.mrf.mxu0
    %v262 = vadd.f32 %v197, %v261
    %263 = vmatmul.f32.gmra.mxu0 %v73
    %v264 = vpop.f32.mrf.mxu0
    %v265 = vadd.f32 %v200, %v264
    %266 = vmatmul.f32.gmra.mxu0 %v75
    %v267 = vpop.f32.mrf.mxu0
    %v268 = vadd.f32 %v203, %v267
    %269 = vdwg.mxu0
    %270 = vmatpush.msra.mxu0 %v107
    %271 = vmatpush.msra.mxu0 %v105
    %272 = vmatpush.msra.mxu0 %v103
    %273 = vmatpush.msra.mxu0 %v101
    %274 = vmatpush.msra.mxu0 %v99
    %275 = vmatpush.msra.mxu0 %v97
    %276 = vmatpush.msra.mxu0 %v95
    %277 = vmatpush.msra.mxu0 %v93
    %278 = vmatpush.msra.mxu0 %v91
    %279 = vmatpush.msra.mxu0 %v89
    %280 = vmatpush.msra.mxu0 %v87
    %281 = vmatpush.msra.mxu0 %v85
    %282 = vmatpush.msra.mxu0 %v83
    %283 = vmatpush.msra.mxu0 %v81
    %284 = vmatpush.msra.mxu0 %v79
    %285 = vmatpush.msra.mxu0 %v77
    %286 = vmatmul.f32.gmra.mxu0 %v44
    %v287 = vpop.f32.mrf.mxu0
    %v288 = vadd.f32 0.0, %v287
    %289 = vmatmul.f32.gmra.mxu0 %v46
    %v290 = vpop.f32.mrf.mxu0
    %v291 = vadd.f32 0.0, %v290
    %292 = vmatmul.f32.gmra.mxu0 %v48
    %v293 = vpop.f32.mrf.mxu0
    %v294 = vadd.f32 0.0, %v293
    %295 = vmatmul.f32.gmra.mxu0 %v50
    %v296 = vpop.f32.mrf.mxu0
    %v297 = vadd.f32 0.0, %v296
    %298 = vmatmul.f32.gmra.mxu0 %v52
    %v299 = vpop.f32.mrf.mxu0
    %v300 = vadd.f32 0.0, %v299
    %301 = vmatmul.f32.gmra.mxu0 %v54
    %v302 = vpop.f32.mrf.mxu0
    %v303 = vadd.f32 0.0, %v302
    %304 = vmatmul.f32.gmra.mxu0 %v56
    %v305 = vpop.f32.mrf.mxu0
    %v306 = vadd.f32 0.0, %v305
    %307 = vmatmul.f32.gmra.mxu0 %v58
    %v308 = vpop.f32.mrf.mxu0
    %v309 = vadd.f32 0.0, %v308
    %310 = vmatmul.f32.gmra.mxu0 %v60
    %v311 = vpop.f32.mrf.mxu0
    %v312 = vadd.f32 0.0, %v311
    %313 = vmatmul.f32.gmra.mxu0 %v62
    %v314 = vpop.f32.mrf.mxu0
    %v315 = vadd.f32 0.0, %v314
    %316 = vmatmul.f32.gmra.mxu0 %v64
    %v317 = vpop.f32.mrf.mxu0
    %v318 = vadd.f32 0.0, %v317
    %319 = vmatmul.f32.gmra.mxu0 %v66
    %v320 = vpop.f32.mrf.mxu0
    %v321 = vadd.f32 0.0, %v320
    %322 = vmatmul.f32.gmra.mxu0 %v68
    %v323 = vpop.f32.mrf.mxu0
    %v324 = vadd.f32 0.0, %v323
    %325 = vmatmul.f32.gmra.mxu0 %v70
    %v326 = vpop.f32.mrf.mxu0
    %v327 = vadd.f32 0.0, %v326
    %328 = vmatmul.f32.gmra.mxu0 %v72
    %v329 = vpop.f32.mrf.mxu0
    %v330 = vadd.f32 0.0, %v329
    %331 = vmatmul.f32.gmra.mxu0 %v74
    %v332 = vpop.f32.mrf.mxu0
    %v333 = vadd.f32 0.0, %v332
    %334 = vdwg.mxu0
    %335 = vmatpush.msra.mxu0 %v139
    %336 = vmatpush.msra.mxu0 %v137
    %337 = vmatpush.msra.mxu0 %v135
    %338 = vmatpush.msra.mxu0 %v133
    %339 = vmatpush.msra.mxu0 %v131
    %340 = vmatpush.msra.mxu0 %v129
    %341 = vmatpush.msra.mxu0 %v127
    %342 = vmatpush.msra.mxu0 %v125
    %343 = vmatpush.msra.mxu0 %v123
    %344 = vmatpush.msra.mxu0 %v121
    %345 = vmatpush.msra.mxu0 %v119
    %346 = vmatpush.msra.mxu0 %v117
    %347 = vmatpush.msra.mxu0 %v115
    %348 = vmatpush.msra.mxu0 %v113
    %349 = vmatpush.msra.mxu0 %v111
    %350 = vmatpush.msra.mxu0 %v109
    %351 = vmatmul.f32.gmra.mxu0 %v45
    %v352 = vpop.f32.mrf.mxu0
    %v353 = vadd.f32 %v288, %v352
    %354 = vmatmul.f32.gmra.mxu0 %v47
    %v355 = vpop.f32.mrf.mxu0
    %v356 = vadd.f32 %v291, %v355
    %357 = vmatmul.f32.gmra.mxu0 %v49
    %v358 = vpop.f32.mrf.mxu0
    %v359 = vadd.f32 %v294, %v358
    %360 = vmatmul.f32.gmra.mxu0 %v51
    %v361 = vpop.f32.mrf.mxu0
    %v362 = vadd.f32 %v297, %v361
    %363 = vmatmul.f32.gmra.mxu0 %v53
    %v364 = vpop.f32.mrf.mxu0
    %v365 = vadd.f32 %v300, %v364
    %366 = vmatmul.f32.gmra.mxu0 %v55
    %v367 = vpop.f32.mrf.mxu0
    %v368 = vadd.f32 %v303, %v367
    %369 = vmatmul.f32.gmra.mxu0 %v57
    %v370 = vpop.f32.mrf.mxu0
    %v371 = vadd.f32 %v306, %v370
    %372 = vmatmul.f32.gmra.mxu0 %v59
    %v373 = vpop.f32.mrf.mxu0
    %v374 = vadd.f32 %v309, %v373
    %375 = vmatmul.f32.gmra.mxu0 %v61
    %v376 = vpop.f32.mrf.mxu0
    %v377 = vadd.f32 %v312, %v376
    %378 = vmatmul.f32.gmra.mxu0 %v63
    %v379 = vpop.f32.mrf.mxu0
    %v380 = vadd.f32 %v315, %v379
    %381 = vmatmul.f32.gmra.mxu0 %v65
    %v382 = vpop.f32.mrf.mxu0
    %v383 = vadd.f32 %v318, %v382
    %384 = vmatmul.f32.gmra.mxu0 %v67
    %v385 = vpop.f32.mrf.mxu0
    %v386 = vadd.f32 %v321, %v385
    %387 = vmatmul.f32.gmra.mxu0 %v69
    %v388 = vpop.f32.mrf.mxu0
    %v389 = vadd.f32 %v324, %v388
    %390 = vmatmul.f32.gmra.mxu0 %v71
    %v391 = vpop.f32.mrf.mxu0
    %v392 = vadd.f32 %v327, %v391
    %393 = vmatmul.f32.gmra.mxu0 %v73
    %v394 = vpop.f32.mrf.mxu0
    %v395 = vadd.f32 %v330, %v394
    %396 = vmatmul.f32.gmra.mxu0 %v75
    %v397 = vpop.f32.mrf.mxu0
    %v398 = vadd.f32 %v333, %v397
    %399 = vdwg.mxu0
    %400 = vst [vmem:[#allocation7] sm:$0xff] %v223
    %401 = vst [vmem:[#allocation7 + $0x8] sm:$0xff] %v353
    %402 = vst [vmem:[#allocation7 + $0x10] sm:$0xff] %v226
    %403 = vst [vmem:[#allocation7 + $0x18] sm:$0xff] %v356
    %404 = vst [vmem:[#allocation7 + $0x20] sm:$0xff] %v229
    %405 = vst [vmem:[#allocation7 + $0x28] sm:$0xff] %v359
    %406 = vst [vmem:[#allocation7 + $0x30] sm:$0xff] %v232
    %407 = vst [vmem:[#allocation7 + $0x38] sm:$0xff] %v362
    %408 = vst [vmem:[#allocation7 + $0x40] sm:$0xff] %v235
    %409 = vst [vmem:[#allocation7 + $0x48] sm:$0xff] %v365
    %410 = vst [vmem:[#allocation7 + $0x50] sm:$0xff] %v238
    %411 = vst [vmem:[#allocation7 + $0x58] sm:$0xff] %v368
    %412 = vst [vmem:[#allocation7 + $0x60] sm:$0xff] %v241
    %413 = vst [vmem:[#allocation7 + $0x68] sm:$0xff] %v371
    %414 = vst [vmem:[#allocation7 + $0x70] sm:$0xff] %v244
    %415 = vst [vmem:[#allocation7 + $0x78] sm:$0xff] %v374
    %416 = vst [vmem:[#allocation7 + $0x80] sm:$0xff] %v247
    %417 = vst [vmem:[#allocation7 + $0x88] sm:$0xff] %v377
    %418 = vst [vmem:[#allocation7 + $0x90] sm:$0xff] %v250
    %419 = vst [vmem:[#allocation7 + $0x98] sm:$0xff] %v380
    %420 = vst [vmem:[#allocation7 + $0xa0] sm:$0xff] %v253
    %421 = vst [vmem:[#allocation7 + $0xa8] sm:$0xff] %v383
    %422 = vst [vmem:[#allocation7 + $0xb0] sm:$0xff] %v256
    %423 = vst [vmem:[#allocation7 + $0xb8] sm:$0xff] %v386
    %424 = vst [vmem:[#allocation7 + $0xc0] sm:$0xff] %v259
    %425 = vst [vmem:[#allocation7 + $0xc8] sm:$0xff] %v389
    %426 = vst [vmem:[#allocation7 + $0xd0] sm:$0xff] %v262
    %427 = vst [vmem:[#allocation7 + $0xd8] sm:$0xff] %v392
    %428 = vst [vmem:[#allocation7 + $0xe0] sm:$0xff] %v265
    %429 = vst [vmem:[#allocation7 + $0xe8] sm:$0xff] %v395
    %430 = vst [vmem:[#allocation7 + $0xf0] sm:$0xff] %v268
    %431 = vst [vmem:[#allocation7 + $0xf8] sm:$0xff] %v398
    // Predicated region
    $region18: #{tpu_custom_call.1} parent=1 // pred_check
      _
    $region19: #{tpu_custom_call.1} parent=1 // pred_check_branch
      %433 = sbr.rel (0) target = $region21
    $region20: #{tpu_custom_call.1} parent=1 // pred_region
      %435 = vsyncadd [#allocation4], 0
      %s436 = sshll.u32 [#allocation7], 4
      %s437 = int_to_ptr.vmem [resolvable:$true] %s436
      %s438 = sshll.u32 %s2, 4
      %s439 = int_to_ptr.hbm [resolvable:$true] %s438
      %444 = dma.vmem_to_hbm [thread:$0]  %s437, 4096, %s439, [#allocation4], 256, 256, 16
    $region21: #{tpu_custom_call.1} parent=1 // pred_fallthru
      _
    // Predicated region
    $region22: #{tpu_custom_call.1} parent=1 // pred_check
      _
    $region23: #{tpu_custom_call.1} parent=1 // pred_check_branch
      %446 = sbr.rel (0) target = $region25
    $region24: #{tpu_custom_call.1} parent=1 // pred_region
      %448 = dma.done [#allocation4], 4096
    $region25: #{tpu_custom_call.1} parent=1 // pred_fallthru
      _
    %449 = vsyncpa [#allocation3], 1
    %450 = vsyncpa [#allocation6], 1
    %451 = vsyncpa [#allocation4], 1

</llo_original>
